<compile_context>
chip_gen: v6e
topology: v6e:2x2x1
jax: 0.10.0
libtpu: 0.0.40
codegen_flags: <defaults>
</compile_context>

<pallas_src>
import math

import jax
import jax.numpy as jnp
from jax.experimental import pallas as pl
from jax.experimental.pallas import tpu as pltpu


def _cdiv(a, b):
    return -(-a // b)


def _round_up(x, m):
    return ((x + m - 1) // m) * m


def _vmem_capacity_bytes():
    """Per-core VMEM capacity; conservative 64 MiB fallback (v7x)."""
    try:
        info = pltpu.get_tpu_info()
        for name in ("vmem_capacity_bytes", "vmem_bytes", "vmem_size_bytes"):
            v = getattr(info, name, None)
            if v:
                return int(v)
    except Exception:
        pass
    return 64 * 1024 * 1024


def _choose_tiling(M, tile_budget):
    """Pick (tile_m, num_steps) for the row axis.

    - tile_m is a multiple of 8 (or == M when M <= 8), never exceeds the array.
    - At least 2 grid steps when M >= 16 so both v7x TensorCores get work.
    - Ragged last block is fine: Pallas drops OOB output writes.
    """
    if M <= 8:
        return M, 1
    steps = _cdiv(M, max(tile_budget, 8))
    if M >= 16:
        steps = max(steps, 2)
    tile = _round_up(_cdiv(M, steps), 8)
    tile = max(8, min(tile, (M // 8) * 8))
    return tile, _cdiv(M, tile)


def last_layer_kernel(dia_ref, pro_ref, w_top_ref, w_bot_ref, b_ref,
                      out_ref, rep_ref):
    H = dia_ref.shape[-1]
    # ReLU6 on both inputs (VPU elementwise), in the native input dtype.
    dia = jnp.clip(dia_ref[...], 0.0, 6.0)
    pro = jnp.clip(pro_ref[...], 0.0, 6.0)

    # input_rep = concat(dia, pro, axis=-1): two slab stores, input dtype,
    # no cross-lane concatenate and no f32 up-conversion of the rep stream.
    rep_ref[:, :H] = dia.astype(rep_ref.dtype)
    rep_ref[:, H:] = pro.astype(rep_ref.dtype)

    # Linear: rep @ W + b == dia @ W_top + pro @ W_bot + b (split-K MXU dots,
    # f32 accumulation).  Matmul operands follow the weight dtype so the
    # bf16-MXU path is enabled simply by passing bf16 weights.
    mm_dtype = w_top_ref.dtype
    acc = jnp.dot(dia.astype(mm_dtype), w_top_ref[...],
                  preferred_element_type=jnp.float32)
    acc = acc + jnp.dot(pro.astype(mm_dtype), w_bot_ref[...],
                        preferred_element_type=jnp.float32)
    out_ref[...] = (acc + b_ref[...].astype(jnp.float32)).astype(out_ref.dtype)


def last_layer_forward(input_dia, input_pro, weight_t, bias, *,
                       tile_m=None, use_bf16_matmul=False):
    """input_dia/input_pro: [..., H]; weight_t: [2H, N]; bias: [N].

    Returns (output [..., N], input_rep [..., 2H]) exactly like the PyTorch
    module's forward.  Outputs use the input dtype.
    """
    lead_shape = input_dia.shape[:-1]
    H = input_dia.shape[-1]
    K, N = weight_t.shape
    assert K == 2 * H

    M = math.prod(lead_shape) if lead_shape else 1

    # No wrapper-side dtype cast / M padding: keep native dtype, ragged grid.
    dia2d = input_dia.reshape(M, H)
    pro2d = input_pro.reshape(M, H)
    act_dtype = dia2d.dtype

    w_top = weight_t[:H, :]
    w_bot = weight_t[H:, :]
    if use_bf16_matmul:
        # Gated: bf16 MXU operands (f32 accumulation preserved in-kernel).
        w_top = w_top.astype(jnp.bfloat16)
        w_bot = w_bot.astype(jnp.bfloat16)
    b2d = bias.reshape(1, N)

    itemsize = jnp.dtype(act_dtype).itemsize
    w_itemsize = jnp.dtype(w_top.dtype).itemsize
    b_itemsize = jnp.dtype(b2d.dtype).itemsize

    vmem_cap = _vmem_capacity_bytes()
    resident = K * N * w_itemsize + N * b_itemsize     # weights + bias (VMEM-resident)
    # Per-row bytes of the double-buffered streams: dia+pro in, rep out, out.
    per_row = (2 * 2 * H + 2 * K + 2 * N) * itemsize
    if tile_m is None:
        budget = max(int(0.6 * vmem_cap) - resident, 8 * per_row)
        tile_m = max(8, min(1024, (budget // per_row) // 8 * 8))
    tile_m_eff, num_steps = _choose_tiling(M, tile_m)
    grid = (num_steps,)

    # VMEM budget (single count of the already-double-buffered streams),
    # with headroom, clamped to ~90% of the chip's actual VMEM capacity.
    working_set = tile_m_eff * per_row + resident
    vmem_limit = int(min(max(int(1.3 * working_set), 16 * 1024 * 1024),
                         int(0.9 * vmem_cap)))

    out2d, rep2d = pl.pallas_call(
        last_layer_kernel,
        out_shape=(
            jax.ShapeDtypeStruct((M, N), act_dtype),
            jax.ShapeDtypeStruct((M, K), act_dtype),
        ),
        grid=grid,
        in_specs=[
            pl.BlockSpec((tile_m_eff, H), lambda i: (i, 0)),
            pl.BlockSpec((tile_m_eff, H), lambda i: (i, 0)),
            # Weights / bias: constant index_map -> VMEM-resident, not re-DMA'd.
            pl.BlockSpec((H, N), lambda i: (0, 0)),
            pl.BlockSpec((H, N), lambda i: (0, 0)),
            pl.BlockSpec((1, N), lambda i: (0, 0)),
        ],
        out_specs=(
            pl.BlockSpec((tile_m_eff, N), lambda i: (i, 0)),
            pl.BlockSpec((tile_m_eff, K), lambda i: (i, 0)),
        ),
        compiler_params=pltpu.CompilerParams(
            dimension_semantics=("parallel",),
            vmem_limit_bytes=vmem_limit,
        ),
    )(dia2d, pro2d, w_top, w_bot, b2d)

    output = out2d.reshape(*lead_shape, N)
    input_rep = rep2d.reshape(*lead_shape, K)
    # TODO(synk): input_rep.requires_grad_()/retain_grad() are autograd-only
    # bookkeeping in PyTorch; no inference-time equivalent.  If rep is only
    # consumed by backward, drop the second output to cut HBM writeback ~2x.
    return output, input_rep


if __name__ == "__main__":
    # Small shapes consistent with the module:
    #   hidden_size = 32, data_dia.shape[2] (output dim) = 16,
    #   input_dia / input_pro: [batch=2, seq=8, hidden=32]
    batch, seq, hidden, out_dim = 2, 8, 32, 16

    key = jax.random.PRNGKey(0)
    k_dia, k_pro, k_w, k_b = jax.random.split(key, 4)

    input_dia = jax.random.normal(k_dia, (batch, seq, hidden), jnp.float32) * 3.0
    input_pro = jax.random.normal(k_pro, (batch, seq, hidden), jnp.float32) * 3.0

    # nn.Linear(hidden*2, out_dim): weight [out_dim, 2H], bias [out_dim].
    fan_in = 2 * hidden
    bound = 1.0 / (fan_in ** 0.5)
    weight = jax.random.uniform(
        k_w, (out_dim, fan_in), jnp.float32, minval=-bound, maxval=bound
    )
    bias = jax.random.uniform(
        k_b, (out_dim,), jnp.float32, minval=-bound, maxval=bound
    )
    weight_t = weight.T  # [2H, out_dim] for rep @ W layout in the kernel.

    output, input_rep = last_layer_forward(input_dia, input_pro, weight_t, bias)
    jax.block_until_ready((output, input_rep))

    # Reference check in plain JAX (same math as the PyTorch module).
    rep_ref = jnp.concatenate(
        [jnp.clip(input_dia, 0.0, 6.0), jnp.clip(input_pro, 0.0, 6.0)], axis=-1
    )
    out_ref = rep_ref @ weight_t + bias

    assert output.shape == (batch, seq, out_dim)
    assert input_rep.shape == (batch, seq, 2 * hidden)
    assert jnp.allclose(output, out_ref, atol=1e-5, rtol=1e-5)
    assert jnp.allclose(input_rep, rep_ref, atol=1e-6, rtol=1e-6)

    print("KERNEL_OK")
</pallas_src>

<mosaic_0001>
module attributes {stable_mosaic.version = 11 : i64} {
  func.func @last_layer_kernel(%arg0: i32, %arg1: memref<8x32xf32, #tpu.memory_space<vmem>>, %arg2: memref<8x32xf32, #tpu.memory_space<vmem>>, %arg3: memref<32x16xf32, #tpu.memory_space<vmem>>, %arg4: memref<32x16xf32, #tpu.memory_space<vmem>>, %arg5: memref<1x16xf32, #tpu.memory_space<vmem>>, %arg6: memref<8x16xf32, #tpu.memory_space<vmem>>, %arg7: memref<8x64xf32, #tpu.memory_space<vmem>>) attributes {dimension_semantics = [#tpu.dimension_semantics<parallel>], iteration_bounds = array<i64: 2>, scalar_prefetch = 0 : i64, scratch_operands = 0 : i64, tpu.core_type = #tpu.core_type<tc>, window_params = [{transform_indices = @transform_0, window_bounds = array<i64: 8, 32>}, {transform_indices = @transform_1, window_bounds = array<i64: 8, 32>}, {pipeline_mode = #tpu.pipeline_mode<synchronous>, transform_indices = @transform_2, window_bounds = array<i64: 32, 16>}, {pipeline_mode = #tpu.pipeline_mode<synchronous>, transform_indices = @transform_3, window_bounds = array<i64: 32, 16>}, {pipeline_mode = #tpu.pipeline_mode<synchronous>, transform_indices = @transform_4, window_bounds = array<i64: 1, 16>}, {transform_indices = @transform_5, window_bounds = array<i64: 8, 16>}, {transform_indices = @transform_6, window_bounds = array<i64: 8, 64>}]} {
    %c0 = arith.constant 0 : index
    %c0_0 = arith.constant 0 : index
    %0 = vector.load %arg1[%c0, %c0_0] : memref<8x32xf32, #tpu.memory_space<vmem>>, vector<8x32xf32>
    %cst = arith.constant 0.000000e+00 : f32
    %cst_1 = arith.constant 6.000000e+00 : f32
    %1 = vector.broadcast %cst : f32 to vector<8x32xf32>
    %2 = arith.maximumf %1, %0 : vector<8x32xf32>
    %3 = vector.broadcast %cst_1 : f32 to vector<8x32xf32>
    %4 = arith.minimumf %3, %2 : vector<8x32xf32>
    %c0_2 = arith.constant 0 : index
    %c0_3 = arith.constant 0 : index
    %5 = vector.load %arg2[%c0_2, %c0_3] : memref<8x32xf32, #tpu.memory_space<vmem>>, vector<8x32xf32>
    %cst_4 = arith.constant 0.000000e+00 : f32
    %cst_5 = arith.constant 6.000000e+00 : f32
    %6 = vector.broadcast %cst_4 : f32 to vector<8x32xf32>
    %7 = arith.maximumf %6, %5 : vector<8x32xf32>
    %8 = vector.broadcast %cst_5 : f32 to vector<8x32xf32>
    %9 = arith.minimumf %8, %7 : vector<8x32xf32>
    %c0_6 = arith.constant 0 : index
    %c0_7 = arith.constant 0 : index
    %10 = vector.load %arg7[%c0_6, %c0_7] : memref<8x64xf32, #tpu.memory_space<vmem>>, vector<8x32xf32>
    tpu.vector_store %arg7[%c0_6, %c0_7], %4 {strides = array<i32>} : memref<8x64xf32, #tpu.memory_space<vmem>>, vector<8x32xf32>,
    %c0_8 = arith.constant 0 : index
    %c32 = arith.constant 32 : index
    %11 = vector.load %arg7[%c0_8, %c32] : memref<8x64xf32, #tpu.memory_space<vmem>>, vector<8x32xf32>
    tpu.vector_store %arg7[%c0_8, %c32], %9 {strides = array<i32>} : memref<8x64xf32, #tpu.memory_space<vmem>>, vector<8x32xf32>,
    %c0_9 = arith.constant 0 : index
    %c0_10 = arith.constant 0 : index
    %12 = vector.load %arg3[%c0_9, %c0_10] : memref<32x16xf32, #tpu.memory_space<vmem>>, vector<32x16xf32>
    %cst_11 = arith.constant dense<0.000000e+00> : vector<8x16xf32>
    %13 = tpu.matmul %4, %12, %cst_11 {dimension_numbers = #tpu.dot_dimension_numbers<[1], [0], [0], [1], [0, 0, 1, 1], [], []>} : vector<8x32xf32>, vector<32x16xf32>, vector<8x16xf32> -> vector<8x16xf32>
    %c0_12 = arith.constant 0 : index
    %c0_13 = arith.constant 0 : index
    %14 = vector.load %arg4[%c0_12, %c0_13] : memref<32x16xf32, #tpu.memory_space<vmem>>, vector<32x16xf32>
    %cst_14 = arith.constant dense<0.000000e+00> : vector<8x16xf32>
    %15 = tpu.matmul %9, %14, %cst_14 {dimension_numbers = #tpu.dot_dimension_numbers<[1], [0], [0], [1], [0, 0, 1, 1], [], []>} : vector<8x32xf32>, vector<32x16xf32>, vector<8x16xf32> -> vector<8x16xf32>
    %16 = arith.addf %13, %15 : vector<8x16xf32>
    %c0_15 = arith.constant 0 : index
    %c0_16 = arith.constant 0 : index
    %17 = vector.load %arg5[%c0_15, %c0_16] : memref<1x16xf32, #tpu.memory_space<vmem>>, vector<1x16xf32>
    %18 = vector.broadcast %17 : vector<1x16xf32> to vector<8x16xf32>
    %19 = arith.addf %16, %18 : vector<8x16xf32>
    %c0_17 = arith.constant 0 : index
    %c0_18 = arith.constant 0 : index
    %20 = vector.load %arg6[%c0_17, %c0_18] : memref<8x16xf32, #tpu.memory_space<vmem>>, vector<8x16xf32>
    tpu.vector_store %arg6[%c0_17, %c0_18], %19 {strides = array<i32>} : memref<8x16xf32, #tpu.memory_space<vmem>>, vector<8x16xf32>,
    return
  }
  func.func @transform_0(%arg0: i32) -> (i32, i32) {
    %c0_i32 = arith.constant 0 : i32
    %c0_i32_0 = arith.constant 0 : i32
    return %arg0, %c0_i32 : i32, i32
  }
  func.func @transform_1(%arg0: i32) -> (i32, i32) {
    %c0_i32 = arith.constant 0 : i32
    %c0_i32_0 = arith.constant 0 : i32
    return %arg0, %c0_i32 : i32, i32
  }
  func.func @transform_2(%arg0: i32) -> (i32, i32) {
    %c0_i32 = arith.constant 0 : i32
    %c0_i32_0 = arith.constant 0 : i32
    %c0_i32_1 = arith.constant 0 : i32
    return %c0_i32, %c0_i32_0 : i32, i32
  }
  func.func @transform_3(%arg0: i32) -> (i32, i32) {
    %c0_i32 = arith.constant 0 : i32
    %c0_i32_0 = arith.constant 0 : i32
    %c0_i32_1 = arith.constant 0 : i32
    return %c0_i32, %c0_i32_0 : i32, i32
  }
  func.func @transform_4(%arg0: i32) -> (i32, i32) {
    %c0_i32 = arith.constant 0 : i32
    %c0_i32_0 = arith.constant 0 : i32
    %c0_i32_1 = arith.constant 0 : i32
    return %c0_i32, %c0_i32_0 : i32, i32
  }
  func.func @transform_5(%arg0: i32) -> (i32, i32) {
    %c0_i32 = arith.constant 0 : i32
    %c0_i32_0 = arith.constant 0 : i32
    return %arg0, %c0_i32 : i32, i32
  }
  func.func @transform_6(%arg0: i32) -> (i32, i32) {
    %c0_i32 = arith.constant 0 : i32
    %c0_i32_0 = arith.constant 0 : i32
    return %arg0, %c0_i32 : i32, i32
  }
}

</mosaic_0001>

<llo_original>
// kernel: tpu_custom_call.1
$region0: #{tpu_custom_call.1}
  #allocation0 [shape = 'u32[]', space=smem, size = 0x4, offset = 0x4, fixed_abs, tag = 'smem constant byte address 0x4 - core index']
  #allocation1 [shape = 'u32[144,128]{1,0:T(1,128)}', space=vmem, size = 0x12000, scoped, tag = 'internal scratch']
  %s0 = inlined_call_operand.vmem [shape: f32[16,32], index: 0, kind: input, shape index: {}]
  %s1 = inlined_call_operand.vmem [shape: f32[16,32], index: 1, kind: input, shape index: {}]
  %s2 = inlined_call_operand.vmem [shape: f32[32,16], index: 2, kind: input, shape index: {}]
  %s3 = inlined_call_operand.vmem [shape: f32[32,16], index: 3, kind: input, shape index: {}]
  %s4 = inlined_call_operand.vmem [shape: f32[1,16], index: 4, kind: input, shape index: {}]
  %s5 = inlined_call_operand.hbm [shape: f32[16,16], index: 5, kind: output, shape index: {0}]
  %s6 = inlined_call_operand.hbm [shape: f32[16,64], index: 6, kind: output, shape index: {1}]
  %7 = xla_tuple %s5, %s6
  %s8 = sld [smem:[#allocation0]]
  $region61: #{tpu_custom_call.1} parent=0
    _
  %s10 = ssub.s32 1, %s8
  %s11 = scalar_select 0, %s10, %s8
  $region1: #{tpu_custom_call.1} parent=0
    #allocation2 [shape = 'u8[8192]{0}', space=vmem, size = 0x2000, scoped, tag = 'output window, operand 0']
    #allocation3 [shape = 's32[2]{0}', space=sflag, size = 0x8, scoped, tag = 'scoped memory for tpu_custom_call.1']
    #allocation4 [shape = 'u8[8192]{0}', space=vmem, size = 0x2000, scoped, tag = 'output window, operand 1']
    #allocation5 [shape = 's32[2]{0}', space=sflag, size = 0x8, scoped, tag = 'scoped memory for tpu_custom_call.1']
    %12 = vsyncpa [#allocation3], 0
    %s13 = scalar_lea.sflag [#allocation3], 1
    %14 = vsyncpa %s13, 0
    %15 = vsyncpa [#allocation5], 0
    %s16 = scalar_lea.sflag [#allocation5], 1
    %17 = vsyncpa %s16, 0
    loop: start=0, step=1, limit=4
    $region2: #{tpu_custom_call.1} parent=1 // loop_pre_header
      _
    $region3: #{tpu_custom_call.1} parent=1 // loop_header
      %s19 = sphi 0, %s23
      %p20 = scmp.ge.s32.totalorder %s19, 4
      %s29 = sphi 0, %s31
      %s32 = sphi 0, %s29
      %s33 = sphi 0, %s32
      %s49 = sphi 0, %s33
      %s55 = sphi 0, %s57
      %s58 = sphi 0, %s55
      %s59 = sphi 0, %s58
      %s75 = sphi 0, %s59
      %s79 = sphi 0, %s79
      %s81 = sphi 0, %s79
      %s82 = sphi 0, %s81
      %s96 = sphi 0, %s82
      %s100 = sphi 0, %s100
      %s102 = sphi 0, %s100
      %s103 = sphi 0, %s102
      %s117 = sphi 0, %s103
      %s121 = sphi 0, %s121
      %s123 = sphi 0, %s121
      %s124 = sphi 0, %s123
      %s138 = sphi 0, %s124
      %s144 = sphi 0, %s146
      %s147 = sphi 0, %s144
      %s148 = sphi 0, %s147
      %s164 = sphi 0, %s148
      %s170 = sphi 0, %s172
      %s173 = sphi 0, %s170
      %s174 = sphi 0, %s173
      %s190 = sphi 0, %s174
    $region4: #{tpu_custom_call.1} parent=1 // loop_header_branch
      %22 = sbr.rel (%p20) target = $region8
    $region5: #{tpu_custom_call.1} parent=1 // loop_body
      %s24 = ssub.s32 %s19, 1
      %s25 = ssub.s32 %s19, 2
      %s26 = sadd.s32 %s19, 1
      %s27 = ssub.s32 %s19, %s26
      %p28 = scmp.eq.s32.totalorder %s27, 0
      %s30 = sadd.s32 %s29, 1
      %s31 = scalar_select %p28, %s29, %s30
      %p34 = pneg %p28
      %p35 = scmp.eq.s32.totalorder %s19, 1
      %p36 = por %p34, %p35
      %p37 = scmp.ne.s32.totalorder %s29, %s32
      %p38 = scmp.eq.s32.totalorder %s19, 0
      %p39 = por %p37, %p38
      %p40 = scmp.ne.s32.totalorder %s29, %s32
      %p41 = scmp.eq.s32.totalorder %s24, 1
      %p42 = por %p40, %p41
      %p43 = scmp.ne.s32.totalorder %s32, %s33
      %p44 = scmp.eq.s32.totalorder %s24, 0
      %p45 = por %p43, %p44
      %p46 = scmp.ne.s32.totalorder %s32, %s33
      %p47 = scmp.eq.s32.totalorder %s25, 1
      %p48 = por %p46, %p47
      %p50 = scmp.ne.s32.totalorder %s33, %s49
      %p51 = scmp.eq.s32.totalorder %s25, 0
      %p52 = por %p50, %p51
      %s53 = ssub.s32 %s19, %s26
      %p54 = scmp.eq.s32.totalorder %s53, 0
      %s56 = sadd.s32 %s55, 1
      %s57 = scalar_select %p54, %s55, %s56
      %p60 = pneg %p54
      %p61 = scmp.eq.s32.totalorder %s19, 1
      %p62 = por %p60, %p61
      %p63 = scmp.ne.s32.totalorder %s55, %s58
      %p64 = scmp.eq.s32.totalorder %s19, 0
      %p65 = por %p63, %p64
      %p66 = scmp.ne.s32.totalorder %s55, %s58
      %p67 = scmp.eq.s32.totalorder %s24, 1
      %p68 = por %p66, %p67
      %p69 = scmp.ne.s32.totalorder %s58, %s59
      %p70 = scmp.eq.s32.totalorder %s24, 0
      %p71 = por %p69, %p70
      %p72 = scmp.ne.s32.totalorder %s58, %s59
      %p73 = scmp.eq.s32.totalorder %s25, 1
      %p74 = por %p72, %p73
      %p76 = scmp.ne.s32.totalorder %s59, %s75
      %p77 = scmp.eq.s32.totalorder %s25, 0
      %p78 = por %p76, %p77
      %s80 = sadd.s32 %s79, 1
      %p83 = scmp.eq.s32.totalorder %s19, 1
      %p84 = scmp.ne.s32.totalorder %s79, %s81
      %p85 = scmp.eq.s32.totalorder %s19, 0
      %p86 = por %p84, %p85
      %p87 = scmp.ne.s32.totalorder %s79, %s81
      %p88 = scmp.eq.s32.totalorder %s24, 1
      %p89 = por %p87, %p88
      %p90 = scmp.ne.s32.totalorder %s81, %s82
      %p91 = scmp.eq.s32.totalorder %s24, 0
      %p92 = por %p90, %p91
      %p93 = scmp.ne.s32.totalorder %s81, %s82
      %p94 = scmp.eq.s32.totalorder %s25, 1
      %p95 = por %p93, %p94
      %p97 = scmp.ne.s32.totalorder %s82, %s96
      %p98 = scmp.eq.s32.totalorder %s25, 0
      %p99 = por %p97, %p98
      %s101 = sadd.s32 %s100, 1
      %p104 = scmp.eq.s32.totalorder %s19, 1
      %p105 = scmp.ne.s32.totalorder %s100, %s102
      %p106 = scmp.eq.s32.totalorder %s19, 0
      %p107 = por %p105, %p106
      %p108 = scmp.ne.s32.totalorder %s100, %s102
      %p109 = scmp.eq.s32.totalorder %s24, 1
      %p110 = por %p108, %p109
      %p111 = scmp.ne.s32.totalorder %s102, %s103
      %p112 = scmp.eq.s32.totalorder %s24, 0
      %p113 = por %p111, %p112
      %p114 = scmp.ne.s32.totalorder %s102, %s103
      %p115 = scmp.eq.s32.totalorder %s25, 1
      %p116 = por %p114, %p115
      %p118 = scmp.ne.s32.totalorder %s103, %s117
      %p119 = scmp.eq.s32.totalorder %s25, 0
      %p120 = por %p118, %p119
      %s122 = sadd.s32 %s121, 1
      %p125 = scmp.eq.s32.totalorder %s19, 1
      %p126 = scmp.ne.s32.totalorder %s121, %s123
      %p127 = scmp.eq.s32.totalorder %s19, 0
      %p128 = por %p126, %p127
      %p129 = scmp.ne.s32.totalorder %s121, %s123
      %p130 = scmp.eq.s32.totalorder %s24, 1
      %p131 = por %p129, %p130
      %p132 = scmp.ne.s32.totalorder %s123, %s124
      %p133 = scmp.eq.s32.totalorder %s24, 0
      %p134 = por %p132, %p133
      %p135 = scmp.ne.s32.totalorder %s123, %s124
      %p136 = scmp.eq.s32.totalorder %s25, 1
      %p137 = por %p135, %p136
      %p139 = scmp.ne.s32.totalorder %s124, %s138
      %p140 = scmp.eq.s32.totalorder %s25, 0
      %p141 = por %p139, %p140
      %s142 = ssub.s32 %s19, %s26
      %p143 = scmp.eq.s32.totalorder %s142, 0
      %s145 = sadd.s32 %s144, 1
      %s146 = scalar_select %p143, %s144, %s145
      %p149 = pneg %p143
      %p150 = scmp.eq.s32.totalorder %s19, 1
      %p151 = por %p149, %p150
      %p152 = scmp.ne.s32.totalorder %s144, %s147
      %p153 = scmp.eq.s32.totalorder %s19, 0
      %p154 = por %p152, %p153
      %p155 = scmp.ne.s32.totalorder %s144, %s147
      %p156 = scmp.eq.s32.totalorder %s24, 1
      %p157 = por %p155, %p156
      %p158 = scmp.ne.s32.totalorder %s147, %s148
      %p159 = scmp.eq.s32.totalorder %s24, 0
      %p160 = por %p158, %p159
      %p161 = scmp.ne.s32.totalorder %s147, %s148
      %p162 = scmp.eq.s32.totalorder %s25, 1
      %p163 = por %p161, %p162
      %p165 = scmp.ne.s32.totalorder %s148, %s164
      %p166 = scmp.eq.s32.totalorder %s25, 0
      %p167 = por %p165, %p166
      %s168 = ssub.s32 %s19, %s26
      %p169 = scmp.eq.s32.totalorder %s168, 0
      %s171 = sadd.s32 %s170, 1
      %s172 = scalar_select %p169, %s170, %s171
      %p175 = pneg %p169
      %p176 = scmp.eq.s32.totalorder %s19, 1
      %p177 = por %p175, %p176
      %p178 = scmp.ne.s32.totalorder %s170, %s173
      %p179 = scmp.eq.s32.totalorder %s19, 0
      %p180 = por %p178, %p179
      %p181 = scmp.ne.s32.totalorder %s170, %s173
      %p182 = scmp.eq.s32.totalorder %s24, 1
      %p183 = por %p181, %p182
      %p184 = scmp.ne.s32.totalorder %s173, %s174
      %p185 = scmp.eq.s32.totalorder %s24, 0
      %p186 = por %p184, %p185
      %p187 = scmp.ne.s32.totalorder %s173, %s174
      %p188 = scmp.eq.s32.totalorder %s25, 1
      %p189 = por %p187, %p188
      %p191 = scmp.ne.s32.totalorder %s174, %s190
      %p192 = scmp.eq.s32.totalorder %s25, 0
      %p193 = por %p191, %p192
      %p194 = scmp.le.s32.totalorder 1, %s19
      %p195 = scmp.lt.s32.totalorder %s19, 3
      %p196 = pnand %p194, %p195
      %p197 = pneg %p196
      // Predicated region
      $region9: #{tpu_custom_call.1} parent=5 // pred_check
        _
      $region10: #{tpu_custom_call.1} parent=5 // pred_check_branch
        %199 = sbr.rel (%p196) target = $region12
      $region11: #{tpu_custom_call.1} parent=5 // pred_region
        %s200 = ssub.s32 %s19, 1
        // Predicated region
        $region13: #{tpu_custom_call.1} parent=11 // pred_check
          %p201 = pneg %p92
        $region14: #{tpu_custom_call.1} parent=11 // pred_check_branch
          %203 = sbr.rel (%p201) target = $region16
        $region15: #{tpu_custom_call.1} parent=11 // pred_region
          _
        $region16: #{tpu_custom_call.1} parent=11 // pred_fallthru
          _
        // Predicated region
        $region17: #{tpu_custom_call.1} parent=11 // pred_check
          %p204 = pneg %p113
        $region18: #{tpu_custom_call.1} parent=11 // pred_check_branch
          %206 = sbr.rel (%p204) target = $region20
        $region19: #{tpu_custom_call.1} parent=11 // pred_region
          _
        $region20: #{tpu_custom_call.1} parent=11 // pred_fallthru
          _
        // Predicated region
        $region21: #{tpu_custom_call.1} parent=11 // pred_check
          %p207 = pneg %p134
        $region22: #{tpu_custom_call.1} parent=11 // pred_check_branch
          %209 = sbr.rel (%p207) target = $region24
        $region23: #{tpu_custom_call.1} parent=11 // pred_region
          _
        $region24: #{tpu_custom_call.1} parent=11 // pred_fallthru
          _
      $region12: #{tpu_custom_call.1} parent=5 // pred_fallthru
        _
      %p210 = scmp.lt.s32.totalorder %s19, 2
      // Predicated region
      $region25: #{tpu_custom_call.1} parent=5 // pred_check
        %p211 = pneg %p210
      $region26: #{tpu_custom_call.1} parent=5 // pred_check_branch
        %213 = sbr.rel (%p211) target = $region28
      $region27: #{tpu_custom_call.1} parent=5 // pred_region
        // Predicated region
        $region29: #{tpu_custom_call.1} parent=27 // pred_check
          %p214 = pneg %p39
        $region30: #{tpu_custom_call.1} parent=27 // pred_check_branch
          %216 = sbr.rel (%p214) target = $region32
        $region31: #{tpu_custom_call.1} parent=27 // pred_region
          %p217 = scmp.lt.s32.totalorder %s19, 1
          %s218 = scalar_select %p217, %s19, 1
          %s219 = smul.addr %s218, 8
          %s220 = scalar_lea.vmem %s0, %s219
        $region32: #{tpu_custom_call.1} parent=27 // pred_fallthru
          _
        // Predicated region
        $region33: #{tpu_custom_call.1} parent=27 // pred_check
          %p221 = pneg %p65
        $region34: #{tpu_custom_call.1} parent=27 // pred_check_branch
          %223 = sbr.rel (%p221) target = $region36
        $region35: #{tpu_custom_call.1} parent=27 // pred_region
          %p224 = scmp.lt.s32.totalorder %s19, 1
          %s225 = scalar_select %p224, %s19, 1
          %s226 = smul.addr %s225, 8
          %s227 = scalar_lea.vmem %s1, %s226
        $region36: #{tpu_custom_call.1} parent=27 // pred_fallthru
          _
      $region28: #{tpu_custom_call.1} parent=5 // pred_fallthru
        _
      %p228 = scmp.le.s32.totalorder 1, %s19
      %p229 = scmp.lt.s32.totalorder %s19, 3
      %p230 = pnand %p228, %p229
      %p231 = pneg %p230
      // Predicated region
      $region37: #{tpu_custom_call.1} parent=5 // pred_check
        _
      $region38: #{tpu_custom_call.1} parent=5 // pred_check_branch
        %233 = sbr.rel (%p230) target = $region40
      $region39: #{tpu_custom_call.1} parent=5 // pred_region
        %s234 = ssub.s32 %s19, 1
        %p235 = scmp.lt.s32.totalorder %s24, 1
        %s236 = scalar_select %p235, %s24, 1
        %s237 = smul.addr %s236, 8
        %s238 = scalar_lea.vmem %s0, %s237
        %p239 = pneg %p45
        %p240 = pneg %p42
        %p241 = scmp.lt.s32.totalorder %s24, 1
        %s242 = scalar_select %p241, %s24, 1
        %s243 = smul.addr %s242, 8
        %s244 = scalar_lea.vmem %s1, %s243
        %p245 = pneg %p71
        %p246 = pneg %p68
        %p247 = pneg %p92
        %p248 = pneg %p89
        %p249 = pneg %p113
        %p250 = pneg %p110
        %p251 = pneg %p134
        %p252 = pneg %p131
        %p253 = pneg %p160
        %p254 = pneg %p157
        %s255 = sand.u32 %s147, 1
        %s256 = scalar_lea.sflag [#allocation3], %s255
        %s257 = sand.u32 %s147, 1
        %s258 = smul.addr %s257, 8
        %s259 = scalar_lea.vmem [#allocation2], %s258
        %p260 = pneg %p186
        %p261 = pneg %p183
        %s262 = sand.u32 %s173, 1
        %s263 = scalar_lea.sflag [#allocation5], %s262
        %s264 = sand.u32 %s173, 1
        %s265 = smul.addr %s264, 8
        %s266 = scalar_lea.vmem [#allocation4], %s265
        %p267 = scmp.lt.s32.totalorder %s24, 1
        %s268 = scalar_select %p267, %s24, 1
        %s269 = smul.addr %s268, 8
        %s270 = scalar_lea.vmem %s0, %s269
        %p271 = scmp.lt.s32.totalorder %s24, 1
        %s272 = scalar_select %p271, %s24, 1
        %s273 = smul.addr %s272, 8
        %s274 = scalar_lea.vmem %s1, %s273
        %v275 = vld [vmem:[%s270] sm:$0xff]
        %v276 = vmax.f32 %v275, 0.0
        %v277 = vmin.f32 %v276, 6.0
        %v278 = vld [vmem:[%s274] sm:$0xff]
        %v279 = vmax.f32 %v278, 0.0
        %v280 = vmin.f32 %v279, 6.0
        %vm281 = vcmask 261120
        %282 = vst.msk [vmem:[%s266] sm:$0xff] %vm281, %v277
        %284 = vrot.lane.b32.xlu0 %v280, 32
        %v285 = vpop.permute.xlu0 %284
        %vm287 = vcmask 523520
        %288 = vst.msk [vmem:[%s266] sm:$0xff] %vm287, %v285
        %v289 = vld [vmem:[%s2] sm:$0xff]
        %v290 = vld [vmem:[%s2 + $0x8] sm:$0xff]
        %v291 = vld [vmem:[%s2 + $0x10] sm:$0xff]
        %v292 = vld [vmem:[%s2 + $0x18] sm:$0xff]
        %v293 = vld [vmem:[%s3] sm:$0xff]
        %v294 = vld [vmem:[%s3 + $0x8] sm:$0xff]
        %v295 = vld [vmem:[%s3 + $0x10] sm:$0xff]
        %v296 = vld [vmem:[%s3 + $0x18] sm:$0xff]
        %v297 = vsel %vm281, %v280, 0
        %299 = vmatprep.subr.mxu0 0.0
        %300 = vmatpush1.msra.mxu0 0.0
        %301 = vmatprep.subr.mxu0 0.0
        %302 = vmatpush1.msra.mxu0 0.0
        %303 = vmatprep.subr.mxu0 0.0
        %304 = vmatpush1.msra.mxu0 0.0
        %305 = vmatprep.subr.mxu0 0.0
        %306 = vmatpush1.msra.mxu0 0.0
        %307 = vmatprep.subr.mxu0 0.0
        %308 = vmatpush1.msra.mxu0 0.0
        %309 = vmatprep.subr.mxu0 0.0
        %310 = vmatpush1.msra.mxu0 0.0
        %311 = vmatprep.subr.mxu0 0.0
        %312 = vmatpush1.msra.mxu0 0.0
        %313 = vmatprep.subr.mxu0 0.0
        %314 = vmatpush1.msra.mxu0 0.0
        %315 = vmatprep.subr.mxu0 0.0
        %316 = vmatpush1.msra.mxu0 0.0
        %317 = vmatprep.subr.mxu0 0.0
        %318 = vmatpush1.msra.mxu0 0.0
        %319 = vmatprep.subr.mxu0 0.0
        %320 = vmatpush1.msra.mxu0 0.0
        %321 = vmatprep.subr.mxu0 0.0
        %322 = vmatpush1.msra.mxu0 0.0
        %323 = vmatprep.subr.mxu0 0.0
        %324 = vmatpush1.msra.mxu0 %v296
        %325 = vmatprep.subr.mxu0 0.0
        %326 = vmatpush1.msra.mxu0 %v295
        %327 = vmatprep.subr.mxu0 0.0
        %328 = vmatpush1.msra.mxu0 %v294
        %329 = vmatprep.subr.mxu0 0.0
        %330 = vmatpush1.msra.mxu0 %v293
        %331 = vmatprep.subr.mxu0 0.0
        %332 = vmatpush2.msra.mxu0 0.0
        %333 = vmatprep.subr.mxu0 0.0
        %334 = vmatpush2.msra.mxu0 0.0
        %335 = vmatprep.subr.mxu0 0.0
        %336 = vmatpush2.msra.mxu0 0.0
        %337 = vmatprep.subr.mxu0 0.0
        %338 = vmatpush2.msra.mxu0 0.0
        %339 = vmatprep.subr.mxu0 0.0
        %340 = vmatpush2.msra.mxu0 0.0
        %341 = vmatprep.subr.mxu0 0.0
        %342 = vmatpush2.msra.mxu0 0.0
        %343 = vmatprep.subr.mxu0 0.0
        %344 = vmatpush2.msra.mxu0 0.0
        %345 = vmatprep.subr.mxu0 0.0
        %346 = vmatpush2.msra.mxu0 0.0
        %347 = vmatprep.subr.mxu0 0.0
        %348 = vmatpush2.msra.mxu0 0.0
        %349 = vmatprep.subr.mxu0 0.0
        %350 = vmatpush2.msra.mxu0 0.0
        %351 = vmatprep.subr.mxu0 0.0
        %352 = vmatpush2.msra.mxu0 0.0
        %353 = vmatprep.subr.mxu0 0.0
        %354 = vmatpush2.msra.mxu0 0.0
        %355 = vmatprep.subr.mxu0 0.0
        %356 = vmatpush2.msra.mxu0 0.0
        %357 = vmatprep.subr.mxu0 0.0
        %358 = vmatpush2.msra.mxu0 0.0
        %359 = vmatprep.subr.mxu0 0.0
        %360 = vmatpush2.msra.mxu0 0.0
        %361 = vmatprep.subr.mxu0 0.0
        %362 = vmatpush2.msra.mxu0 0.0
        %363 = vmatprep.mubr.f32.mxu0 0.0
        %364 = vmatmul.mubr.f32.gmra.mxu0 %v297
        %v365 = vpop.f32.mrf.mxu0
        %v366 = vadd.f32 0.0, %v365
        %v367 = vpop.f32.mrf.mxu0
        %368 = vdwg.mxu0
        %v370 = vsel %vm281, %v277, 0
        %372 = vmatprep.subr.mxu0 0.0
        %373 = vmatpush1.msra.mxu0 0.0
        %374 = vmatprep.subr.mxu0 0.0
        %375 = vmatpush1.msra.mxu0 0.0
        %376 = vmatprep.subr.mxu0 0.0
        %377 = vmatpush1.msra.mxu0 0.0
        %378 = vmatprep.subr.mxu0 0.0
        %379 = vmatpush1.msra.mxu0 0.0
        %380 = vmatprep.subr.mxu0 0.0
        %381 = vmatpush1.msra.mxu0 0.0
        %382 = vmatprep.subr.mxu0 0.0
        %383 = vmatpush1.msra.mxu0 0.0
        %384 = vmatprep.subr.mxu0 0.0
        %385 = vmatpush1.msra.mxu0 0.0
        %386 = vmatprep.subr.mxu0 0.0
        %387 = vmatpush1.msra.mxu0 0.0
        %388 = vmatprep.subr.mxu0 0.0
        %389 = vmatpush1.msra.mxu0 0.0
        %390 = vmatprep.subr.mxu0 0.0
        %391 = vmatpush1.msra.mxu0 0.0
        %392 = vmatprep.subr.mxu0 0.0
        %393 = vmatpush1.msra.mxu0 0.0
        %394 = vmatprep.subr.mxu0 0.0
        %395 = vmatpush1.msra.mxu0 0.0
        %396 = vmatprep.subr.mxu0 0.0
        %397 = vmatpush1.msra.mxu0 %v292
        %398 = vmatprep.subr.mxu0 0.0
        %399 = vmatpush1.msra.mxu0 %v291
        %400 = vmatprep.subr.mxu0 0.0
        %401 = vmatpush1.msra.mxu0 %v290
        %402 = vmatprep.subr.mxu0 0.0
        %403 = vmatpush1.msra.mxu0 %v289
        %404 = vmatprep.subr.mxu0 0.0
        %405 = vmatpush2.msra.mxu0 0.0
        %406 = vmatprep.subr.mxu0 0.0
        %407 = vmatpush2.msra.mxu0 0.0
        %408 = vmatprep.subr.mxu0 0.0
        %409 = vmatpush2.msra.mxu0 0.0
        %410 = vmatprep.subr.mxu0 0.0
        %411 = vmatpush2.msra.mxu0 0.0
        %412 = vmatprep.subr.mxu0 0.0
        %413 = vmatpush2.msra.mxu0 0.0
        %414 = vmatprep.subr.mxu0 0.0
        %415 = vmatpush2.msra.mxu0 0.0
        %416 = vmatprep.subr.mxu0 0.0
        %417 = vmatpush2.msra.mxu0 0.0
        %418 = vmatprep.subr.mxu0 0.0
        %419 = vmatpush2.msra.mxu0 0.0
        %420 = vmatprep.subr.mxu0 0.0
        %421 = vmatpush2.msra.mxu0 0.0
        %422 = vmatprep.subr.mxu0 0.0
        %423 = vmatpush2.msra.mxu0 0.0
        %424 = vmatprep.subr.mxu0 0.0
        %425 = vmatpush2.msra.mxu0 0.0
        %426 = vmatprep.subr.mxu0 0.0
        %427 = vmatpush2.msra.mxu0 0.0
        %428 = vmatprep.subr.mxu0 0.0
        %429 = vmatpush2.msra.mxu0 0.0
        %430 = vmatprep.subr.mxu0 0.0
        %431 = vmatpush2.msra.mxu0 0.0
        %432 = vmatprep.subr.mxu0 0.0
        %433 = vmatpush2.msra.mxu0 0.0
        %434 = vmatprep.subr.mxu0 0.0
        %435 = vmatpush2.msra.mxu0 0.0
        %436 = vmatprep.mubr.f32.mxu0 0.0
        %437 = vmatmul.mubr.f32.gmra.mxu0 %v370
        %v438 = vpop.f32.mrf.mxu0
        %v439 = vadd.f32 %v366, %v438
        %v440 = vpop.f32.mrf.mxu0
        %441 = vdwg.mxu0
        %v442 = vld [vmem:[%s4] sm:$0x1]
        %v444 = vlaneseq
        %v445 = vshrl.u32 %v444, 7
        %v446 = vsub.s32 0, %v445
        %v447 = vrot.slane %v442, %v446
        %v449 = vadd.f32 %v439, %v447
        %vm450 = vcmask 130048
        %451 = vst.msk [vmem:[%s259] sm:$0xff] %vm450, %v449
        %s452 = sand.u32 %s147, 1
        %s453 = scalar_lea.sflag [#allocation3], %s452
        %s454 = sand.u32 %s147, 1
        %s455 = smul.addr %s454, 8
        %s456 = scalar_lea.vmem [#allocation2], %s455
        %s457 = sand.u32 %s173, 1
        %s458 = scalar_lea.sflag [#allocation5], %s457
        %s459 = sand.u32 %s173, 1
        %s460 = smul.addr %s459, 8
        %s461 = scalar_lea.vmem [#allocation4], %s460
        // Predicated region
        $region41: #{tpu_custom_call.1} parent=39 // pred_check
          %p462 = pneg %p157
        $region42: #{tpu_custom_call.1} parent=39 // pred_check_branch
          %464 = sbr.rel (%p462) target = $region44
        $region43: #{tpu_custom_call.1} parent=39 // pred_region
          %s466 = ssub.s32 128, 128
          %467 = vsyncadd %s453, %s466
          %s468 = smul.addr %s24, 128
          %s469 = scalar_lea.hbm %s5, %s468
          %s471 = sshll.u32 %s456, 4
          %s472 = int_to_ptr.vmem [resolvable:$true] %s471
          %474 = dma.vmem_to_hbm [thread:$0]  %s472, 128, %s469, %s453
        $region44: #{tpu_custom_call.1} parent=39 // pred_fallthru
          _
        // Predicated region
        $region45: #{tpu_custom_call.1} parent=39 // pred_check
          %p475 = pneg %p183
        $region46: #{tpu_custom_call.1} parent=39 // pred_check_branch
          %477 = sbr.rel (%p475) target = $region48
        $region47: #{tpu_custom_call.1} parent=39 // pred_region
          %s479 = ssub.s32 128, 128
          %480 = vsyncadd %s458, %s479
          %s481 = smul.addr %s24, 128
          %s482 = scalar_lea.hbm %s6, %s481
          %s484 = sshll.u32 %s461, 4
          %s485 = int_to_ptr.vmem [resolvable:$true] %s484
          %487 = dma.vmem_to_hbm [thread:$0]  %s485, 128, %s482, %s458
        $region48: #{tpu_custom_call.1} parent=39 // pred_fallthru
          _
      $region40: #{tpu_custom_call.1} parent=5 // pred_fallthru
        _
      %p488 = scmp.le.s32.totalorder 2, %s19
      // Predicated region
      $region49: #{tpu_custom_call.1} parent=5 // pred_check
        %p489 = pneg %p488
      $region50: #{tpu_custom_call.1} parent=5 // pred_check_branch
        %491 = sbr.rel (%p489) target = $region52
      $region51: #{tpu_custom_call.1} parent=5 // pred_region
        %s492 = ssub.s32 %s19, 2
        // Predicated region
        $region53: #{tpu_custom_call.1} parent=51 // pred_check
          %p493 = pneg %p163
        $region54: #{tpu_custom_call.1} parent=51 // pred_check_branch
          %495 = sbr.rel (%p493) target = $region56
        $region55: #{tpu_custom_call.1} parent=51 // pred_region
          %s496 = sand.u32 %s148, 1
          %s497 = scalar_lea.sflag [#allocation3], %s496
          %s498 = sand.u32 %s148, 1
          %s499 = smul.addr %s498, 8
          %s500 = scalar_lea.vmem [#allocation2], %s499
          %501 = dma.done %s497, 128
        $region56: #{tpu_custom_call.1} parent=51 // pred_fallthru
          _
        // Predicated region
        $region57: #{tpu_custom_call.1} parent=51 // pred_check
          %p502 = pneg %p189
        $region58: #{tpu_custom_call.1} parent=51 // pred_check_branch
          %504 = sbr.rel (%p502) target = $region60
        $region59: #{tpu_custom_call.1} parent=51 // pred_region
          %s505 = sand.u32 %s174, 1
          %s506 = scalar_lea.sflag [#allocation5], %s505
          %s507 = sand.u32 %s174, 1
          %s508 = smul.addr %s507, 8
          %s509 = scalar_lea.vmem [#allocation4], %s508
          %510 = dma.done %s506, 128
        $region60: #{tpu_custom_call.1} parent=51 // pred_fallthru
          _
      $region52: #{tpu_custom_call.1} parent=5 // pred_fallthru
        _
    $region6: #{tpu_custom_call.1} parent=1 // loop_footer
      %s23 = sadd.s32 1, %s19
    $region7: #{tpu_custom_call.1} parent=1 // loop_footer_branch
      %18 = sbr.rel target = $region3
    $region8: #{tpu_custom_call.1} parent=1 // loop_exit
      _
    %511 = vsyncpa [#allocation3], 1
    %s512 = scalar_lea.sflag [#allocation3], 1
    %513 = vsyncpa %s512, 1
    %514 = vsyncpa [#allocation5], 1
    %s515 = scalar_lea.sflag [#allocation5], 1
    %516 = vsyncpa %s515, 1

</llo_original>
